<compile_context>
chip_gen: v7x
topology: tpu7x:2x2x1
jax: 0.10.0
libtpu: 0.0.40
codegen_flags: <defaults>
</compile_context>

<pallas_src>
import math

import numpy as np
import jax
import jax.numpy as jnp
from jax.experimental import pallas as pl
from jax.experimental.pallas import tpu as pltpu


def _round_up(x, m):
    return ((x + m - 1) // m) * m


def _vmem_capacity_bytes():
    try:
        return int(pltpu.get_tpu_info().vmem_capacity_bytes)
    except Exception:
        return 64 * 1024 * 1024  # conservative fallback (v7x per-TC VMEM)


# ------------------------------ Pallas kernels ------------------------------ #
def _linear_kernel(x_ref, w_ref, b_ref, o_ref):
    """Single-K-block tile: one full-depth MXU dot, fused bias, direct store.

    x_ref: (tm, kdim)   activations (cast to the weight dtype per tile)
    w_ref: (kdim, tn)   weights
    b_ref: (1, tn)      bias (f32)
    o_ref: (tm, tn)     output tile
    """
    acc = jnp.dot(x_ref[...].astype(w_ref.dtype), w_ref[...],
                  preferred_element_type=jnp.float32)
    o_ref[...] = (acc + b_ref[...].astype(jnp.float32)).astype(o_ref.dtype)


def _linear_kernel_ktiled(x_ref, w_ref, b_ref, o_ref, acc_ref):
    """K-tiled variant: accumulate over the K grid axis in f32 VMEM scratch."""
    k = pl.program_id(2)

    @pl.when(k == 0)
    def _():
        acc_ref[...] = jnp.zeros_like(acc_ref)

    acc_ref[...] += jnp.dot(x_ref[...].astype(w_ref.dtype), w_ref[...],
                            preferred_element_type=jnp.float32)

    @pl.when(k == pl.num_programs(2) - 1)
    def _():
        o_ref[...] = (acc_ref[...] + b_ref[...].astype(jnp.float32)
                      ).astype(o_ref.dtype)


# ------------------------------ tile selection ------------------------------ #
def _select_tiles(batch, kdim, n_pad, x_isz, w_isz, o_isz, budget):
    """Pick (tm, tn, tk) so the double-buffered blocks (+acc) fit `budget`."""
    if batch >= 128:
        tm_cands = [t for t in (512, 256, 128) if t <= batch]
    else:
        # one full-extent M block: legal for any batch (incl. non-multiples of 8)
        tm_cands = [batch]
    tn_cands = [t for t in (512, 256, 128) if n_pad % t == 0] or [n_pad]
    tk_cands = [kdim] + [d for d in (8192, 4096, 2048, 1024, 512, 256)
                         if d < kdim and kdim % d == 0]

    def need(tm, tn, tk):
        return (2 * tm * tk * x_isz                     # x double buffer
                + 2 * tk * tn * w_isz                   # w double buffer
                + 2 * 8 * tn * 4                        # bias double buffer
                + 2 * tm * tn * o_isz                   # out double buffer
                + (tm * tn * 4 if tk != kdim else 0))   # f32 accumulator

    for tm in tm_cands:          # largest tm first: max weight reuse from HBM
        for tn in tn_cands:      # widest lane-dense N tile
            for tk in tk_cands:  # untiled K first (no acc / no K grid axis)
                if need(tm, tn, tk) <= budget:
                    return tm, tn, tk, need(tm, tn, tk)
    tm, tn, tk = tm_cands[-1], tn_cands[-1], tk_cands[-1]
    return tm, tn, tk, need(tm, tn, tk)


# --------------------------- pallas_call wrapper ---------------------------- #
def _bridger_linear_pallas(x2, w2, b2, *, out_dtype):
    """y = x2 @ w2 + b2, tiled for the TPU MXU.

    x2: (B, kdim)      flat activations (any float dtype; cast in-kernel)
    w2: (kdim, n_pad)  weights, N pre-padded to a lane multiple
    b2: (1, n_pad)     bias (f32)
    returns (B, n_pad); caller slices the N padding off.
    """
    batch, kdim = x2.shape
    n_pad = w2.shape[1]

    x_isz = np.dtype(x2.dtype).itemsize
    w_isz = np.dtype(w2.dtype).itemsize
    o_isz = np.dtype(out_dtype).itemsize

    capacity = _vmem_capacity_bytes()
    budget = capacity // 2          # ~64 MiB on v5e/v6e, ~32 MiB on v7x
    tm, tn, tk, vmem_need = _select_tiles(batch, kdim, n_pad,
                                          x_isz, w_isz, o_isz, budget)
    vmem_limit = int(max(4 * 1024 * 1024,
                         min(max(budget, vmem_need + (2 << 20)),
                             120 * 1024 * 1024)))

    cost = pl.CostEstimate(
        flops=2 * batch * kdim * n_pad,
        transcendentals=0,
        bytes_accessed=(x2.size * x_isz + w2.size * w_isz
                        + b2.size * 4 + batch * n_pad * o_isz),
    )

    if tk == kdim:
        # Common case: full-K dot per tile, no accumulator, 2-D grid.
        grid_spec = pltpu.PrefetchScalarGridSpec(
            num_scalar_prefetch=0,
            grid=(pl.cdiv(batch, tm), n_pad // tn),
            in_specs=[
                pl.BlockSpec((tm, kdim), lambda i, j: (i, 0)),
                pl.BlockSpec((kdim, tn), lambda i, j: (0, j)),
                pl.BlockSpec((1, tn), lambda i, j: (0, j)),
            ],
            out_specs=pl.BlockSpec((tm, tn), lambda i, j: (i, j)),
        )
        kernel = _linear_kernel
        semantics = ("parallel", "parallel")
    else:
        # Large input_dim: tile K as an "arbitrary" reduction grid axis.
        grid_spec = pltpu.PrefetchScalarGridSpec(
            num_scalar_prefetch=0,
            grid=(pl.cdiv(batch, tm), n_pad // tn, kdim // tk),
            in_specs=[
                pl.BlockSpec((tm, tk), lambda i, j, k: (i, k)),
                pl.BlockSpec((tk, tn), lambda i, j, k: (k, j)),
                pl.BlockSpec((1, tn), lambda i, j, k: (0, j)),
            ],
            out_specs=pl.BlockSpec((tm, tn), lambda i, j, k: (i, j)),
            scratch_shapes=[pltpu.VMEM((tm, tn), jnp.float32)],
        )
        kernel = _linear_kernel_ktiled
        semantics = ("parallel", "parallel", "arbitrary")

    return pl.pallas_call(
        kernel,
        out_shape=jax.ShapeDtypeStruct((batch, n_pad), out_dtype),
        grid_spec=grid_spec,
        compiler_params=pltpu.CompilerParams(
            dimension_semantics=semantics,
            vmem_limit_bytes=vmem_limit,
        ),
        cost_estimate=cost,
    )(x2, w2, b2)


# -------------------------------- MLPBridger ------------------------------- #
_PALLAS_MIN_MACS = 128 * 1024 * 1024  # below this, XLA's fused dot wins


class MLPBridger:
    """JAX/Pallas port of dss_vae MLPBridger (forward only)."""

    def __init__(self, rnn_type, enc_dim, enc_layer, dec_dim, dec_layer,
                 batch_first=False, key=None, dtype=jnp.float32,
                 param_dtype=None):
        self.rnn_type = rnn_type
        self.enc_dim = enc_dim
        self.enc_layer = enc_layer
        self.dec_dim = dec_dim
        self.dec_layer = dec_layer
        self.batch_first = batch_first
        self.input_dim = enc_dim * enc_layer
        self.output_dim = dec_dim * dec_layer
        self.is_identity = self.input_dim == self.output_dim  # mapper = reflect

        if self.is_identity:
            self.w2 = None
            self.b2 = None
            self.out_dim_pad = self.output_dim
            return

        param_dtype = dtype if param_dtype is None else param_dtype
        if key is None:
            key = jax.random.PRNGKey(0)
        kw, kb = jax.random.split(key)
        # torch.nn.Linear-style init: W (out, in), b (out,), U(-1/sqrt(in), +)
        bound = 1.0 / math.sqrt(self.input_dim)
        w = jax.random.uniform(kw, (self.output_dim, self.input_dim),
                               jnp.float32, minval=-bound, maxval=bound)
        b = jax.random.uniform(kb, (self.output_dim,), jnp.float32,
                               minval=-bound, maxval=bound)

        # Pad N once at init so output tiles are lane-dense; pad to a 256
        # multiple (v6e/v7x MXU N width) once output_dim exceeds 128.
        self.out_dim_pad = (_round_up(self.output_dim, 256)
                            if self.output_dim > 128 else 128)
        w_t = w.T  # (input_dim, output_dim); feature k*enc_dim+h is row k*enc_dim+h
        pad_n = self.out_dim_pad - self.output_dim
        if pad_n:
            w_t = jnp.pad(w_t, ((0, 0), (0, pad_n)))
            b = jnp.pad(b, (0, pad_n))
        self.w2 = w_t.astype(param_dtype)                       # (input_dim, Np)
        self.b2 = b.reshape(1, self.out_dim_pad).astype(jnp.float32)

    # --------------------------------------------------------------------- #
    def __call__(self, inputs, *, use_pallas="auto"):
        if self.batch_first:
            batch, nums, hid = inputs.shape
            flat = inputs.reshape(batch, nums * hid)            # free view
        else:
            nums, batch, hid = inputs.shape
            # One host-side transpose buys full-K MXU fill in the kernel
            # (far cheaper than running every dot at K = enc_dim fill).
            flat = jnp.transpose(inputs, (1, 0, 2)).reshape(batch, nums * hid)

        if self.is_identity:
            mapped = flat
        else:
            if use_pallas == "auto":
                use_pallas = (batch * self.input_dim * self.output_dim
                              >= _PALLAS_MIN_MACS)
            if use_pallas:
                y = _bridger_linear_pallas(flat, self.w2, self.b2,
                                           out_dtype=inputs.dtype)
                mapped = y[:, :self.output_dim]
            else:
                # Tiny problem: pallas_call launch/DMA-setup overhead dominates;
                # let XLA fuse the dot + bias add.
                mapped = (jnp.dot(flat.astype(self.w2.dtype), self.w2,
                                  preferred_element_type=jnp.float32)
                          + self.b2)[:, :self.output_dim].astype(inputs.dtype)

        outputs = mapped.reshape(batch, self.dec_layer, self.dec_dim)
        if self.batch_first:
            return jnp.transpose(outputs, (1, 0, 2))
        return outputs


# ----------------------------------- demo ---------------------------------- #
if __name__ == "__main__":
    key = jax.random.PRNGKey(0)
    k_in, k_params, k_in2 = jax.random.split(key, 3)

    # --- Linear path, batch_first=False (main Pallas kernel path) --------- #
    enc_dim, enc_layer = 32, 2    # input_dim  = 64
    dec_dim, dec_layer = 64, 2    # output_dim = 128  (!= input_dim -> Linear)
    batch = 8

    bridger = MLPBridger("lstm", enc_dim, enc_layer, dec_dim, dec_layer,
                         batch_first=False, key=k_params)

    # batch_first=False: inputs are (nums, batch, hid) = (enc_layer, B, enc_dim)
    x = jax.random.normal(k_in, (enc_layer, batch, enc_dim), jnp.float32)
    out = jax.block_until_ready(bridger(x, use_pallas=True))
    assert out.shape == (batch, dec_layer, dec_dim), out.shape

    # plain-JAX reference
    flat = jnp.transpose(x, (1, 0, 2)).reshape(batch, enc_layer * enc_dim)
    w_valid = bridger.w2[:, :bridger.output_dim]
    b_valid = bridger.b2[0, :bridger.output_dim]
    ref = (jnp.dot(flat, w_valid, preferred_element_type=jnp.float32)
           + b_valid).reshape(batch, dec_layer, dec_dim)
    assert jnp.allclose(out, ref, atol=1e-4, rtol=1e-4), \
        float(jnp.max(jnp.abs(out - ref)))

    # --- Linear path, batch_first=True (free flatten, same kernel) -------- #
    bridger_bf = MLPBridger("lstm", enc_dim, enc_layer, dec_dim, dec_layer,
                            batch_first=True, key=k_params)
    x_bf = jax.random.normal(k_in2, (batch, enc_layer, enc_dim), jnp.float32)
    out_bf = jax.block_until_ready(bridger_bf(x_bf, use_pallas=True))
    assert out_bf.shape == (dec_layer, batch, dec_dim), out_bf.shape
    flat_bf = x_bf.reshape(batch, enc_layer * enc_dim)
    ref_bf = (jnp.dot(flat_bf, bridger_bf.w2[:, :bridger_bf.output_dim],
                      preferred_element_type=jnp.float32)
              + bridger_bf.b2[0, :bridger_bf.output_dim])
    ref_bf = jnp.transpose(ref_bf.reshape(batch, dec_layer, dec_dim), (1, 0, 2))
    assert jnp.allclose(out_bf, ref_bf, atol=1e-4, rtol=1e-4)

    # --- Identity path (input_dim == output_dim -> reflect) --------------- #
    ident = MLPBridger("lstm", enc_dim=64, enc_layer=2, dec_dim=32, dec_layer=4,
                       batch_first=False)
    xi = jax.random.normal(k_in, (2, batch, 64), jnp.float32)
    oi = jax.block_until_ready(ident(xi))
    ri = jnp.transpose(xi, (1, 0, 2)).reshape(batch, 4, 32)
    assert jnp.allclose(oi, ri)

    print("KERNEL_OK")
</pallas_src>

<mosaic_0001>
module attributes {stable_mosaic.version = 11 : i64} {
  func.func @_linear_kernel(%arg0: i32, %arg1: i32, %arg2: memref<8x64xf32, #tpu.memory_space<vmem>>, %arg3: memref<64x128xf32, #tpu.memory_space<vmem>>, %arg4: memref<1x128xf32, #tpu.memory_space<vmem>>, %arg5: memref<8x128xf32, #tpu.memory_space<vmem>>) attributes {dimension_semantics = [#tpu.dimension_semantics<parallel>, #tpu.dimension_semantics<parallel>], iteration_bounds = array<i64: 1, 1>, scalar_prefetch = 0 : i64, scratch_operands = 0 : i64, tpu.core_type = #tpu.core_type<tc>, window_params = [{transform_indices = @transform_0, window_bounds = array<i64: 8, 64>}, {transform_indices = @transform_1, window_bounds = array<i64: 64, 128>}, {transform_indices = @transform_2, window_bounds = array<i64: 1, 128>}, {transform_indices = @transform_3, window_bounds = array<i64: 8, 128>}]} {
    %c0 = arith.constant 0 : index
    %c0_0 = arith.constant 0 : index
    %0 = vector.load %arg2[%c0, %c0_0] : memref<8x64xf32, #tpu.memory_space<vmem>>, vector<8x64xf32>
    %c0_1 = arith.constant 0 : index
    %c0_2 = arith.constant 0 : index
    %1 = vector.load %arg3[%c0_1, %c0_2] : memref<64x128xf32, #tpu.memory_space<vmem>>, vector<64x128xf32>
    %cst = arith.constant dense<0.000000e+00> : vector<8x128xf32>
    %2 = tpu.matmul %0, %1, %cst {dimension_numbers = #tpu.dot_dimension_numbers<[1], [0], [0], [1], [0, 0, 1, 1], [], []>} : vector<8x64xf32>, vector<64x128xf32>, vector<8x128xf32> -> vector<8x128xf32>
    %c0_3 = arith.constant 0 : index
    %c0_4 = arith.constant 0 : index
    %3 = vector.load %arg4[%c0_3, %c0_4] : memref<1x128xf32, #tpu.memory_space<vmem>>, vector<1x128xf32>
    %4 = vector.broadcast %3 : vector<1x128xf32> to vector<8x128xf32>
    %5 = arith.addf %2, %4 : vector<8x128xf32>
    %c0_5 = arith.constant 0 : index
    %c0_6 = arith.constant 0 : index
    %6 = vector.load %arg5[%c0_5, %c0_6] : memref<8x128xf32, #tpu.memory_space<vmem>>, vector<8x128xf32>
    tpu.vector_store %arg5[%c0_5, %c0_6], %5 {strides = array<i32>} : memref<8x128xf32, #tpu.memory_space<vmem>>, vector<8x128xf32>,
    return
  }
  func.func @transform_0(%arg0: i32, %arg1: i32) -> (i32, i32) {
    %c0_i32 = arith.constant 0 : i32
    %c0_i32_0 = arith.constant 0 : i32
    return %arg0, %c0_i32 : i32, i32
  }
  func.func @transform_1(%arg0: i32, %arg1: i32) -> (i32, i32) {
    %c0_i32 = arith.constant 0 : i32
    %c0_i32_0 = arith.constant 0 : i32
    return %c0_i32, %arg1 : i32, i32
  }
  func.func @transform_2(%arg0: i32, %arg1: i32) -> (i32, i32) {
    %c0_i32 = arith.constant 0 : i32
    %c0_i32_0 = arith.constant 0 : i32
    return %c0_i32, %arg1 : i32, i32
  }
  func.func @transform_3(%arg0: i32, %arg1: i32) -> (i32, i32) {
    %c0_i32 = arith.constant 0 : i32
    return %arg0, %arg1 : i32, i32
  }
}

</mosaic_0001>

<llo_original>
// kernel: tpu_custom_call.1
$region0: #{tpu_custom_call.1}
  #allocation0 [shape = 'u32[]', space=smem, size = 0x4, offset = 0x4, fixed_abs, tag = 'smem constant byte address 0x4 - core index']
  #allocation1 [shape = 'u32[144,128]{1,0:T(1,128)}', space=vmem, size = 0x12000, scoped, tag = 'internal scratch']
  %s0 = inlined_call_operand.hbm [shape: f32[8,64], index: 0, kind: input, shape index: {}]
  %s1 = inlined_call_operand.hbm [shape: f32[64,128], index: 1, kind: input, shape index: {}]
  %s2 = inlined_call_operand.vmem [shape: f32[1,128], index: 2, kind: input, shape index: {}]
  %s3 = inlined_call_operand.hbm [shape: f32[8,128], index: 3, kind: output, shape index: {}]
  %s4 = sld [smem:[#allocation0]]
  $region30: #{tpu_custom_call.1} parent=0
    _
  %s6 = ssub.s32 1, %s4
  %s7 = scalar_select 0, %s6, %s4
  $region1: #{tpu_custom_call.1} parent=0
    #allocation2 [shape = 'u8[4096]{0}', space=vmem, size = 0x1000, scoped, tag = 'input window, operand 0, single buffered']
    #allocation3 [shape = 's32[1]{0}', space=sflag, size = 0x4, scoped, tag = 'scoped memory for tpu_custom_call.1']
    #allocation4 [shape = 's32[1]{0}', space=sflag, size = 0x4, scoped, tag = 'scoped memory for tpu_custom_call.1']
    #allocation5 [shape = 'u8[32768]{0}', space=vmem, size = 0x8000, scoped, tag = 'input window, operand 1, single buffered']
    #allocation6 [shape = 's32[1]{0}', space=sflag, size = 0x4, scoped, tag = 'scoped memory for tpu_custom_call.1']
    #allocation7 [shape = 'u8[4096]{0}', space=vmem, size = 0x1000, scoped, tag = 'output window, operand 0, single buffered']
    %8 = vsyncpa [#allocation3], 0
    %9 = vsyncpa [#allocation6], 0
    %10 = vsyncpa [#allocation4], 0
    // Predicated region
    $region2: #{tpu_custom_call.1} parent=1 // pred_check
      _
    $region3: #{tpu_custom_call.1} parent=1 // pred_check_branch
      %12 = sbr.rel (0) target = $region5
    $region4: #{tpu_custom_call.1} parent=1 // pred_region
      %s14 = ssub.s32 128, 128
      %15 = vsyncadd [#allocation3], %s14
      %s17 = sshll.u32 [#allocation2], 4
      %s18 = int_to_ptr.vmem [resolvable:$true] %s17
      %20 = dma.hbm_to_vmem [thread:$0]  %s0, 128, %s18, [#allocation3]
    $region5: #{tpu_custom_call.1} parent=1 // pred_fallthru
      _
    // Predicated region
    $region6: #{tpu_custom_call.1} parent=1 // pred_check
      _
    $region7: #{tpu_custom_call.1} parent=1 // pred_check_branch
      %22 = sbr.rel (0) target = $region9
    $region8: #{tpu_custom_call.1} parent=1 // pred_region
      %s24 = ssub.s32 1024, 1024
      %25 = vsyncadd [#allocation6], %s24
      %s26 = sshll.u32 [#allocation5], 4
      %s27 = int_to_ptr.vmem [resolvable:$true] %s26
      %32 = dma.hbm_to_vmem [thread:$0]  %s1, 1024, %s27, [#allocation6], 128, 128, 8
    $region9: #{tpu_custom_call.1} parent=1 // pred_fallthru
      _
    // Predicated region
    $region10: #{tpu_custom_call.1} parent=1 // pred_check
      _
    $region11: #{tpu_custom_call.1} parent=1 // pred_check_branch
      %34 = sbr.rel (0) target = $region13
    $region12: #{tpu_custom_call.1} parent=1 // pred_region
      _
    $region13: #{tpu_custom_call.1} parent=1 // pred_fallthru
      _
    // Predicated region
    $region14: #{tpu_custom_call.1} parent=1 // pred_check
      _
    $region15: #{tpu_custom_call.1} parent=1 // pred_check_branch
      %36 = sbr.rel (0) target = $region17
    $region16: #{tpu_custom_call.1} parent=1 // pred_region
      %37 = dma.done [#allocation3], 128
    $region17: #{tpu_custom_call.1} parent=1 // pred_fallthru
      _
    // Predicated region
    $region18: #{tpu_custom_call.1} parent=1 // pred_check
      _
    $region19: #{tpu_custom_call.1} parent=1 // pred_check_branch
      %39 = sbr.rel (0) target = $region21
    $region20: #{tpu_custom_call.1} parent=1 // pred_region
      %40 = dma.done [#allocation6], 1024
    $region21: #{tpu_custom_call.1} parent=1 // pred_fallthru
      _
    %v41 = vld [vmem:[#allocation2] sm:$0xff]
    %v42 = vld [vmem:[#allocation5] sm:$0xff]
    %v43 = vld [vmem:[#allocation5 + $0x8] sm:$0xff]
    %v44 = vld [vmem:[#allocation5 + $0x10] sm:$0xff]
    %v45 = vld [vmem:[#allocation5 + $0x18] sm:$0xff]
    %v46 = vld [vmem:[#allocation5 + $0x20] sm:$0xff]
    %v47 = vld [vmem:[#allocation5 + $0x28] sm:$0xff]
    %v48 = vld [vmem:[#allocation5 + $0x30] sm:$0xff]
    %v49 = vld [vmem:[#allocation5 + $0x38] sm:$0xff]
    %v50 = vld [vmem:[%s2] sm:$0x1]
    %v52 = vlaneseq
    %v53 = vshrl.u32 %v52, 7
    %v54 = vsub.s32 0, %v53
    %v55 = vrot.slane %v50, %v54
    %vm57 = vcmask 523264
    %v59 = vsel %vm57, %v41, 0
    %61 = vmatprep.subr.mxu0 0.0
    %62 = vmatpush1.msra.mxu0 %v42
    %63 = vmatprep.subr.mxu0 0.0
    %64 = vmatpush1.msra.mxu0 %v43
    %65 = vmatprep.subr.mxu0 0.0
    %66 = vmatpush1.msra.mxu0 %v44
    %67 = vmatprep.subr.mxu0 0.0
    %68 = vmatpush1.msra.mxu0 %v45
    %69 = vmatprep.subr.mxu0 0.0
    %70 = vmatpush1.msra.mxu0 %v46
    %71 = vmatprep.subr.mxu0 0.0
    %72 = vmatpush1.msra.mxu0 %v47
    %73 = vmatprep.subr.mxu0 0.0
    %74 = vmatpush1.msra.mxu0 %v48
    %75 = vmatprep.subr.mxu0 0.0
    %76 = vmatpush1.msra.mxu0 %v49
    %77 = vmatprep.subr.mxu0 0.0
    %78 = vmatpush1.msra.mxu0 0.0
    %79 = vmatprep.subr.mxu0 0.0
    %80 = vmatpush1.msra.mxu0 0.0
    %81 = vmatprep.subr.mxu0 0.0
    %82 = vmatpush1.msra.mxu0 0.0
    %83 = vmatprep.subr.mxu0 0.0
    %84 = vmatpush1.msra.mxu0 0.0
    %85 = vmatprep.subr.mxu0 0.0
    %86 = vmatpush1.msra.mxu0 0.0
    %87 = vmatprep.subr.mxu0 0.0
    %88 = vmatpush1.msra.mxu0 0.0
    %89 = vmatprep.subr.mxu0 0.0
    %90 = vmatpush1.msra.mxu0 0.0
    %91 = vmatprep.subr.mxu0 0.0
    %92 = vmatpush1.msra.mxu0 0.0
    %93 = vmatprep.subr.mxu0 0.0
    %94 = vmatpush1.msra.mxu0 0.0
    %95 = vmatprep.subr.mxu0 0.0
    %96 = vmatpush1.msra.mxu0 0.0
    %97 = vmatprep.subr.mxu0 0.0
    %98 = vmatpush1.msra.mxu0 0.0
    %99 = vmatprep.subr.mxu0 0.0
    %100 = vmatpush1.msra.mxu0 0.0
    %101 = vmatprep.subr.mxu0 0.0
    %102 = vmatpush1.msra.mxu0 0.0
    %103 = vmatprep.subr.mxu0 0.0
    %104 = vmatpush1.msra.mxu0 0.0
    %105 = vmatprep.subr.mxu0 0.0
    %106 = vmatpush1.msra.mxu0 0.0
    %107 = vmatprep.subr.mxu0 0.0
    %108 = vmatpush1.msra.mxu0 0.0
    %109 = vmatprep.subr.mxu0 0.0
    %110 = vmatpush1.msra.mxu0 0.0
    %111 = vmatprep.subr.mxu0 0.0
    %112 = vmatpush1.msra.mxu0 0.0
    %113 = vmatprep.subr.mxu0 0.0
    %114 = vmatpush1.msra.mxu0 0.0
    %115 = vmatprep.subr.mxu0 0.0
    %116 = vmatpush1.msra.mxu0 0.0
    %117 = vmatprep.subr.mxu0 0.0
    %118 = vmatpush1.msra.mxu0 0.0
    %119 = vmatprep.subr.mxu0 0.0
    %120 = vmatpush1.msra.mxu0 0.0
    %121 = vmatprep.subr.mxu0 0.0
    %122 = vmatpush1.msra.mxu0 0.0
    %123 = vmatprep.subr.mxu0 0.0
    %124 = vmatpush1.msra.mxu0 0.0
    %125 = vmatprep.mubr.f32.mxu0 0.0
    %126 = vmatmul.mubr.f32.gmra.mrb[0].mxu0 %v59
    %v127 = vpop.f32.mrb[0].mxu0
    %v128 = vadd.f32 %v55, %v127
    %v129 = vpop.f32.mrb[0].mxu0
    %130 = vdwg.mxu0
    %131 = vst [vmem:[#allocation7] sm:$0xff] %v128
    // Predicated region
    $region22: #{tpu_custom_call.1} parent=1 // pred_check
      _
    $region23: #{tpu_custom_call.1} parent=1 // pred_check_branch
      %133 = sbr.rel (0) target = $region25
    $region24: #{tpu_custom_call.1} parent=1 // pred_region
      %s135 = ssub.s32 128, 128
      %136 = vsyncadd [#allocation4], %s135
      %s138 = sshll.u32 [#allocation7], 4
      %s139 = int_to_ptr.vmem [resolvable:$true] %s138
      %141 = dma.vmem_to_hbm [thread:$0]  %s139, 128, %s3, [#allocation4]
    $region25: #{tpu_custom_call.1} parent=1 // pred_fallthru
      _
    // Predicated region
    $region26: #{tpu_custom_call.1} parent=1 // pred_check
      _
    $region27: #{tpu_custom_call.1} parent=1 // pred_check_branch
      %143 = sbr.rel (0) target = $region29
    $region28: #{tpu_custom_call.1} parent=1 // pred_region
      %144 = dma.done [#allocation4], 128
    $region29: #{tpu_custom_call.1} parent=1 // pred_fallthru
      _
    %145 = vsyncpa [#allocation3], 1
    %146 = vsyncpa [#allocation6], 1
    %147 = vsyncpa [#allocation4], 1

</llo_original>
